<compile_context>
chip_gen: v7x
topology: tpu7x:2x2x1
jax: 0.10.0
libtpu: 0.0.40
codegen_flags: <defaults>
</compile_context>

<pallas_src>
import jax
import jax.numpy as jnp
import numpy as np
from jax.experimental import pallas as pl
from jax.experimental.pallas import tpu as pltpu

_LANE = 128


def _make_mlp_kernel(T, B):
    """Build the fused kernel for a static number of steps T and batch B."""

    def kernel(ts_ref,             # (T,) int32                SMEM
               x_ref,              # (T*B, d_data)             VMEM
               w1_ref, b1_ref,     # (d_data, H), (1, H)       VMEM (head)
               w2_ref, b2_ref,     # (H, H), (1, H)            VMEM (head)
               tw1_ref, tb1_ref,   # (N, H, H), (N, 1, H)      VMEM (tail stacks)
               tw2_ref, tb2_ref,   # (N, H, d_pad), (N, 1, d_pad)
               o_ref,              # (T*B, d_pad)              VMEM
               h_ref):             # (T*B, H)                  VMEM scratch
        x = x_ref[...]
        d_data = x.shape[1]

        # ---- shared head, batched over all T*B rows ------------------------
        # layer 1: K = d_data (=2) is degenerate for the MXU -> VPU
        # broadcast multiply-adds (static, unrolled).
        h = b1_ref[...]                                   # (1, H) broadcasts up
        for k in range(d_data):
            h = h + x[:, k:k + 1] * w1_ref[k:k + 1, :]    # (TB,1)*(1,H) -> (TB,H)
        h = jnp.maximum(h, 0.0)

        # layer 2: one MXU pass with M = T*B rows.
        h = jnp.dot(h, w2_ref[...], preferred_element_type=jnp.float32) + b2_ref[...]
        h_ref[...] = jnp.maximum(h, 0.0)

        # ---- per-step tails: dynamic selection from VMEM-resident stacks ---
        for i in range(T):                                # static unrolled loop
            t = ts_ref[i]                                 # scalar from SMEM
            hb = h_ref[i * B:(i + 1) * B, :]              # (B, H), static slice
            g = jnp.dot(hb, tw1_ref[t],
                        preferred_element_type=jnp.float32) + tb1_ref[t]
            g = jnp.maximum(g, 0.0)
            out = jnp.dot(g, tw2_ref[t],
                          preferred_element_type=jnp.float32) + tb2_ref[t]
            o_ref[i * B:(i + 1) * B, :] = out.astype(o_ref.dtype)

    return kernel


def mlp_forward_steps(xs, ts, packed):
    """Fused multi-step forward: ONE gridless pallas_call over T timesteps.

    xs: (T, B, d_data) f32 -- one input batch per step
    ts: (T,) int           -- tail index per step
    packed: dict from pack_params()
    returns: (T, B, 2*d_data)
    """
    w1, b1 = packed["w1"], packed["b1"]
    w2, b2 = packed["w2"], packed["b2"]
    tw1, tb1 = packed["tail_w1"], packed["tail_b1"]
    tw2, tb2 = packed["tail_w2"], packed["tail_b2"]
    d_out = packed["d_out"]

    T, B, d_data = xs.shape
    H = w1.shape[1]
    d_pad = tw2.shape[2]
    N = tw1.shape[0]

    # Bounds-safety: an out-of-range t would silently read wrong tail weights.
    ts = jnp.clip(jnp.asarray(ts, dtype=jnp.int32), 0, N - 1)
    x2 = xs.reshape(T * B, d_data)

    vmem = lambda: pl.BlockSpec(memory_space=pltpu.MemorySpace.VMEM)
    smem = pl.BlockSpec(memory_space=pltpu.MemorySpace.SMEM)

    out = pl.pallas_call(
        _make_mlp_kernel(T, B),
        out_shape=jax.ShapeDtypeStruct((T * B, d_pad), xs.dtype),
        in_specs=[smem] + [vmem() for _ in range(9)],
        out_specs=vmem(),
        scratch_shapes=[pltpu.VMEM((T * B, H), jnp.float32)],
    )(ts, x2, w1, b1, w2, b2, tw1, tb1, tw2, tb2)

    return out[:, :d_out].reshape(T, B, d_out)


def mlp_forward(x, t, packed):
    """Single-step forward matching the PyTorch MLP.forward(x, t)."""
    out = mlp_forward_steps(x[None], jnp.asarray([t], dtype=jnp.int32), packed)
    return out[0]


def init_params(key, N=40, d_data=2, d_hidden=64):
    ks = jax.random.split(key, 8)
    s = 0.1
    return {
        "w1": s * jax.random.normal(ks[0], (d_data, d_hidden), jnp.float32),
        "b1": s * jax.random.normal(ks[1], (1, d_hidden), jnp.float32),
        "w2": s * jax.random.normal(ks[2], (d_hidden, d_hidden), jnp.float32),
        "b2": s * jax.random.normal(ks[3], (1, d_hidden), jnp.float32),
        "tail_w1": s * jax.random.normal(ks[4], (N, d_hidden, d_hidden), jnp.float32),
        "tail_b1": s * jax.random.normal(ks[5], (N, 1, d_hidden), jnp.float32),
        "tail_w2": s * jax.random.normal(ks[6], (N, d_hidden, 2 * d_data), jnp.float32),
        "tail_b2": s * jax.random.normal(ks[7], (N, 1, 2 * d_data), jnp.float32),
    }


def pack_params(params, lane=_LANE):
    """Pad the final projection to a lane-dense (multiple-of-128) output width.

    Pad columns are zero, so slicing [..., :d_out] afterwards is exact.
    """
    d_out = params["tail_w2"].shape[-1]
    d_pad = ((d_out + lane - 1) // lane) * lane
    pad = d_pad - d_out
    packed = dict(params)
    packed["tail_w2"] = jnp.pad(params["tail_w2"], ((0, 0), (0, 0), (0, pad)))
    packed["tail_b2"] = jnp.pad(params["tail_b2"], ((0, 0), (0, 0), (0, pad)))
    packed["d_out"] = d_out
    return packed


def mlp_reference(x, t, params):
    h = jnp.maximum(x @ params["w1"] + params["b1"], 0.0)
    h = jnp.maximum(h @ params["w2"] + params["b2"], 0.0)
    h = jnp.maximum(h @ params["tail_w1"][t] + params["tail_b1"][t], 0.0)
    return h @ params["tail_w2"][t] + params["tail_b2"][t]


if __name__ == "__main__":
    key = jax.random.PRNGKey(0)
    kx, kxs, kt, kp = jax.random.split(key, 4)

    N, d_data, d_hidden = 40, 2, 64
    B, T = 8, 12

    params = init_params(kp, N=N, d_data=d_data, d_hidden=d_hidden)
    packed = pack_params(params)

    # 1) single-step call (original nn.Module semantics)
    x = jax.random.normal(kx, (B, d_data), jnp.float32)
    t = 7
    out = jax.block_until_ready(mlp_forward(x, t, packed))
    ref = mlp_reference(x, t, params)
    np.testing.assert_allclose(np.asarray(out), np.asarray(ref),
                               rtol=2e-3, atol=2e-3)

    # 2) fused multi-step call: one gridless pallas_call over T timesteps
    xs = jax.random.normal(kxs, (T, B, d_data), jnp.float32)
    ts = jax.random.randint(kt, (T,), 0, N, dtype=jnp.int32)
    outs = jax.block_until_ready(mlp_forward_steps(xs, ts, packed))
    refs = jnp.stack([mlp_reference(xs[i], int(ts[i]), params) for i in range(T)])
    np.testing.assert_allclose(np.asarray(outs), np.asarray(refs),
                               rtol=2e-3, atol=2e-3)

    print("KERNEL_OK")
</pallas_src>

<mosaic_0001>
module attributes {stable_mosaic.version = 11 : i64} {
  func.func @kernel(%arg0: memref<1xi32, #tpu.memory_space<smem>>, %arg1: memref<8x2xf32, #tpu.memory_space<vmem>>, %arg2: memref<2x64xf32, #tpu.memory_space<vmem>>, %arg3: memref<1x64xf32, #tpu.memory_space<vmem>>, %arg4: memref<64x64xf32, #tpu.memory_space<vmem>>, %arg5: memref<1x64xf32, #tpu.memory_space<vmem>>, %arg6: memref<40x64x64xf32, #tpu.memory_space<vmem>>, %arg7: memref<40x1x64xf32, #tpu.memory_space<vmem>>, %arg8: memref<40x64x128xf32, #tpu.memory_space<vmem>>, %arg9: memref<40x1x128xf32, #tpu.memory_space<vmem>>, %arg10: memref<8x128xf32, #tpu.memory_space<vmem>>, %arg11: memref<8x64xf32, #tpu.memory_space<vmem>>) attributes {dimension_semantics = [], scalar_prefetch = 0 : i64, scratch_operands = 1 : i64, tpu.core_type = #tpu.core_type<tc>} {
    %c0 = arith.constant 0 : index
    %c0_0 = arith.constant 0 : index
    %0 = vector.load %arg1[%c0, %c0_0] : memref<8x2xf32, #tpu.memory_space<vmem>>, vector<8x2xf32>
    %c0_1 = arith.constant 0 : index
    %c0_2 = arith.constant 0 : index
    %1 = vector.load %arg3[%c0_1, %c0_2] : memref<1x64xf32, #tpu.memory_space<vmem>>, vector<1x64xf32>
    %2 = vector.extract_strided_slice %0 {offsets = [0, 0], sizes = [8, 1], strides = [1, 1]} : vector<8x2xf32> to vector<8x1xf32>
    %c0_3 = arith.constant 0 : index
    %c0_4 = arith.constant 0 : index
    %3 = vector.load %arg2[%c0_3, %c0_4] : memref<2x64xf32, #tpu.memory_space<vmem>>, vector<1x64xf32>
    %4 = vector.broadcast %2 : vector<8x1xf32> to vector<8x64xf32>
    %5 = vector.broadcast %3 : vector<1x64xf32> to vector<8x64xf32>
    %6 = arith.mulf %4, %5 : vector<8x64xf32>
    %7 = vector.broadcast %1 : vector<1x64xf32> to vector<8x64xf32>
    %8 = arith.addf %7, %6 : vector<8x64xf32>
    %9 = vector.extract_strided_slice %0 {offsets = [0, 1], sizes = [8, 1], strides = [1, 1]} : vector<8x2xf32> to vector<8x1xf32>
    %c1 = arith.constant 1 : index
    %c0_5 = arith.constant 0 : index
    %10 = vector.load %arg2[%c1, %c0_5] : memref<2x64xf32, #tpu.memory_space<vmem>>, vector<1x64xf32>
    %11 = vector.broadcast %9 : vector<8x1xf32> to vector<8x64xf32>
    %12 = vector.broadcast %10 : vector<1x64xf32> to vector<8x64xf32>
    %13 = arith.mulf %11, %12 : vector<8x64xf32>
    %14 = arith.addf %8, %13 : vector<8x64xf32>
    %cst = arith.constant 0.000000e+00 : f32
    %15 = vector.broadcast %cst : f32 to vector<8x64xf32>
    %16 = arith.maximumf %14, %15 : vector<8x64xf32>
    %c0_6 = arith.constant 0 : index
    %c0_7 = arith.constant 0 : index
    %17 = vector.load %arg4[%c0_6, %c0_7] : memref<64x64xf32, #tpu.memory_space<vmem>>, vector<64x64xf32>
    %cst_8 = arith.constant dense<0.000000e+00> : vector<8x64xf32>
    %18 = tpu.matmul %16, %17, %cst_8 {dimension_numbers = #tpu.dot_dimension_numbers<[1], [0], [0], [1], [0, 0, 1, 1], [], []>} : vector<8x64xf32>, vector<64x64xf32>, vector<8x64xf32> -> vector<8x64xf32>
    %c0_9 = arith.constant 0 : index
    %c0_10 = arith.constant 0 : index
    %19 = vector.load %arg5[%c0_9, %c0_10] : memref<1x64xf32, #tpu.memory_space<vmem>>, vector<1x64xf32>
    %20 = vector.broadcast %19 : vector<1x64xf32> to vector<8x64xf32>
    %21 = arith.addf %18, %20 : vector<8x64xf32>
    %cst_11 = arith.constant 0.000000e+00 : f32
    %22 = vector.broadcast %cst_11 : f32 to vector<8x64xf32>
    %23 = arith.maximumf %21, %22 : vector<8x64xf32>
    %c0_12 = arith.constant 0 : index
    %c0_13 = arith.constant 0 : index
    %24 = vector.load %arg11[%c0_12, %c0_13] : memref<8x64xf32, #tpu.memory_space<vmem>>, vector<8x64xf32>
    tpu.vector_store %arg11[%c0_12, %c0_13], %23 {strides = array<i32>} : memref<8x64xf32, #tpu.memory_space<vmem>>, vector<8x64xf32>,
    %c0_14 = arith.constant 0 : index
    %25 = memref.load %arg0[%c0_14] : memref<1xi32, #tpu.memory_space<smem>>
    %c0_15 = arith.constant 0 : index
    %c0_16 = arith.constant 0 : index
    %26 = vector.load %arg11[%c0_15, %c0_16] : memref<8x64xf32, #tpu.memory_space<vmem>>, vector<8x64xf32>
    %27 = arith.index_cast %25 : i32 to index
    %c0_17 = arith.constant 0 : index
    %c0_18 = arith.constant 0 : index
    %28 = vector.load %arg6[%27, %c0_17, %c0_18] : memref<40x64x64xf32, #tpu.memory_space<vmem>>, vector<1x64x64xf32>
    %29 = vector.shape_cast %28 : vector<1x64x64xf32> to vector<64x64xf32>
    %cst_19 = arith.constant dense<0.000000e+00> : vector<8x64xf32>
    %30 = tpu.matmul %26, %29, %cst_19 {dimension_numbers = #tpu.dot_dimension_numbers<[1], [0], [0], [1], [0, 0, 1, 1], [], []>} : vector<8x64xf32>, vector<64x64xf32>, vector<8x64xf32> -> vector<8x64xf32>
    %31 = arith.index_cast %25 : i32 to index
    %c0_20 = arith.constant 0 : index
    %c0_21 = arith.constant 0 : index
    %32 = vector.load %arg7[%31, %c0_20, %c0_21] : memref<40x1x64xf32, #tpu.memory_space<vmem>>, vector<1x1x64xf32>
    %33 = vector.shape_cast %32 : vector<1x1x64xf32> to vector<1x64xf32>
    %34 = vector.broadcast %33 : vector<1x64xf32> to vector<8x64xf32>
    %35 = arith.addf %30, %34 : vector<8x64xf32>
    %cst_22 = arith.constant 0.000000e+00 : f32
    %36 = vector.broadcast %cst_22 : f32 to vector<8x64xf32>
    %37 = arith.maximumf %35, %36 : vector<8x64xf32>
    %38 = arith.index_cast %25 : i32 to index
    %c0_23 = arith.constant 0 : index
    %c0_24 = arith.constant 0 : index
    %39 = vector.load %arg8[%38, %c0_23, %c0_24] : memref<40x64x128xf32, #tpu.memory_space<vmem>>, vector<1x64x128xf32>
    %40 = vector.shape_cast %39 : vector<1x64x128xf32> to vector<64x128xf32>
    %cst_25 = arith.constant dense<0.000000e+00> : vector<8x128xf32>
    %41 = tpu.matmul %37, %40, %cst_25 {dimension_numbers = #tpu.dot_dimension_numbers<[1], [0], [0], [1], [0, 0, 1, 1], [], []>} : vector<8x64xf32>, vector<64x128xf32>, vector<8x128xf32> -> vector<8x128xf32>
    %42 = arith.index_cast %25 : i32 to index
    %c0_26 = arith.constant 0 : index
    %c0_27 = arith.constant 0 : index
    %43 = vector.load %arg9[%42, %c0_26, %c0_27] : memref<40x1x128xf32, #tpu.memory_space<vmem>>, vector<1x1x128xf32>
    %44 = vector.shape_cast %43 : vector<1x1x128xf32> to vector<1x128xf32>
    %45 = vector.broadcast %44 : vector<1x128xf32> to vector<8x128xf32>
    %46 = arith.addf %41, %45 : vector<8x128xf32>
    %c0_28 = arith.constant 0 : index
    %c0_29 = arith.constant 0 : index
    %47 = vector.load %arg10[%c0_28, %c0_29] : memref<8x128xf32, #tpu.memory_space<vmem>>, vector<8x128xf32>
    tpu.vector_store %arg10[%c0_28, %c0_29], %46 {strides = array<i32>} : memref<8x128xf32, #tpu.memory_space<vmem>>, vector<8x128xf32>,
    return
  }
}

</mosaic_0001>

<llo_original>
// kernel: tpu_custom_call.1
$region0: #{tpu_custom_call.1}
  #allocation0 [shape = 'u32[]', space=smem, size = 0x4, offset = 0x4, fixed_abs, tag = 'smem constant byte address 0x4 - core index']
  #allocation1 [shape = 'u32[144,128]{1,0:T(1,128)}', space=vmem, size = 0x12000, scoped, tag = 'internal scratch']
  #allocation2 [shape = 'f32[8,64]{1,0:T(8,128)}', space=vmem, size = 0x1000, scoped, tag = 'scratch operand']
  #allocation3 [shape = 's32[1]{0:T(128)S(6)}', space=smem, size = 0x200, scoped, tag = 'scoped memory for tpu_custom_call.1']
  %s0 = inlined_call_operand.<no memory space> [shape: s32[1], index: 0, kind: input, shape index: {}]
  %s1 = inlined_call_operand.vmem [shape: f32[8,2], index: 1, kind: input, shape index: {}]
  %s2 = inlined_call_operand.hbm [shape: f32[2,64], index: 2, kind: input, shape index: {}]
  %s3 = inlined_call_operand.hbm [shape: f32[1,64], index: 3, kind: input, shape index: {}]
  %s4 = inlined_call_operand.hbm [shape: f32[64,64], index: 4, kind: input, shape index: {}]
  %s5 = inlined_call_operand.hbm [shape: f32[1,64], index: 5, kind: input, shape index: {}]
  %s6 = inlined_call_operand.hbm [shape: f32[40,64,64], index: 6, kind: input, shape index: {}]
  %s7 = inlined_call_operand.hbm [shape: f32[40,1,64], index: 7, kind: input, shape index: {}]
  %s8 = inlined_call_operand.hbm [shape: f32[40,64,128], index: 8, kind: input, shape index: {}]
  %s9 = inlined_call_operand.hbm [shape: f32[40,1,128], index: 9, kind: input, shape index: {}]
  %s10 = inlined_call_operand.hbm [shape: f32[8,128], index: 10, kind: output, shape index: {}]
  %s11 = sld [smem:[#allocation0]]
  $region82: #{tpu_custom_call.1} parent=0
    _
  %s13 = ssub.s32 1, %s11
  %s14 = scalar_select 0, %s13, %s11
  %15 = sst [smem:[#allocation3]] %s0
  $region1: #{tpu_custom_call.1} parent=0
    #allocation4 [shape = 'u8[1024]{0}', space=vmem, size = 0x400, scoped, tag = 'input window, operand 2, single buffered']
    #allocation5 [shape = 's32[1]{0}', space=sflag, size = 0x4, scoped, tag = 'scoped memory for tpu_custom_call.1']
    #allocation6 [shape = 's32[1]{0}', space=sflag, size = 0x4, scoped, tag = 'scoped memory for tpu_custom_call.1']
    #allocation7 [shape = 'u8[512]{0}', space=vmem, size = 0x400, scoped, tag = 'input window, operand 3, single buffered']
    #allocation8 [shape = 's32[1]{0}', space=sflag, size = 0x4, scoped, tag = 'scoped memory for tpu_custom_call.1']
    #allocation9 [shape = 'u8[32768]{0}', space=vmem, size = 0x8000, scoped, tag = 'input window, operand 4, single buffered']
    #allocation10 [shape = 'u8[512]{0}', space=vmem, size = 0x400, scoped, tag = 'input window, operand 5, single buffered']
    #allocation11 [shape = 's32[1]{0}', space=sflag, size = 0x4, scoped, tag = 'scoped memory for tpu_custom_call.1']
    #allocation12 [shape = 'u8[1310720]{0}', space=vmem, size = 0x140000, scoped, tag = 'input window, operand 6, single buffered']
    #allocation13 [shape = 'u8[20480]{0}', space=vmem, size = 0x5000, scoped, tag = 'input window, operand 7, single buffered']
    #allocation14 [shape = 's32[1]{0}', space=sflag, size = 0x4, scoped, tag = 'scoped memory for tpu_custom_call.1']
    #allocation15 [shape = 'u8[1310720]{0}', space=vmem, size = 0x140000, scoped, tag = 'input window, operand 8, single buffered']
    #allocation16 [shape = 'u8[20480]{0}', space=vmem, size = 0x5000, scoped, tag = 'input window, operand 9, single buffered']
    #allocation17 [shape = 's32[1]{0}', space=sflag, size = 0x4, scoped, tag = 'scoped memory for tpu_custom_call.1']
    #allocation18 [shape = 'u8[4096]{0}', space=vmem, size = 0x1000, scoped, tag = 'output window, operand 0, single buffered']
    %16 = vsyncpa [#allocation5], 0
    %17 = vsyncpa [#allocation8], 0
    %18 = vsyncpa [#allocation11], 0
    %19 = vsyncpa [#allocation14], 0
    %20 = vsyncpa [#allocation17], 0
    %21 = vsyncpa [#allocation6], 0
    // Predicated region
    $region2: #{tpu_custom_call.1} parent=1 // pred_check
      _
    $region3: #{tpu_custom_call.1} parent=1 // pred_check_branch
      %23 = sbr.rel (0) target = $region5
    $region4: #{tpu_custom_call.1} parent=1 // pred_region
      _
    $region5: #{tpu_custom_call.1} parent=1 // pred_fallthru
      _
    // Predicated region
    $region6: #{tpu_custom_call.1} parent=1 // pred_check
      _
    $region7: #{tpu_custom_call.1} parent=1 // pred_check_branch
      %25 = sbr.rel (0) target = $region9
    $region8: #{tpu_custom_call.1} parent=1 // pred_region
      _
    $region9: #{tpu_custom_call.1} parent=1 // pred_fallthru
      _
    // Predicated region
    $region10: #{tpu_custom_call.1} parent=1 // pred_check
      _
    $region11: #{tpu_custom_call.1} parent=1 // pred_check_branch
      %27 = sbr.rel (0) target = $region13
    $region12: #{tpu_custom_call.1} parent=1 // pred_region
      %s29 = ssub.s32 32, 32
      %30 = vsyncadd [#allocation5], %s29
      %s32 = sshll.u32 [#allocation4], 4
      %s33 = int_to_ptr.vmem [resolvable:$true] %s32
      %35 = dma.hbm_to_vmem [thread:$0]  %s2, 32, %s33, [#allocation5]
    $region13: #{tpu_custom_call.1} parent=1 // pred_fallthru
      _
    // Predicated region
    $region14: #{tpu_custom_call.1} parent=1 // pred_check
      _
    $region15: #{tpu_custom_call.1} parent=1 // pred_check_branch
      %37 = sbr.rel (0) target = $region17
    $region16: #{tpu_custom_call.1} parent=1 // pred_region
      %s39 = ssub.s32 16, 16
      %40 = vsyncadd [#allocation8], %s39
      %s42 = sshll.u32 [#allocation7], 4
      %s43 = int_to_ptr.vmem [resolvable:$true] %s42
      %45 = dma.hbm_to_vmem [thread:$0]  %s3, 16, %s43, [#allocation8]
    $region17: #{tpu_custom_call.1} parent=1 // pred_fallthru
      _
    // Predicated region
    $region18: #{tpu_custom_call.1} parent=1 // pred_check
      _
    $region19: #{tpu_custom_call.1} parent=1 // pred_check_branch
      %47 = sbr.rel (0) target = $region21
    $region20: #{tpu_custom_call.1} parent=1 // pred_region
      %s49 = ssub.s32 1024, 1024
      %50 = vsyncadd [#allocation8], %s49
      %s51 = sshll.u32 [#allocation9], 4
      %s52 = int_to_ptr.vmem [resolvable:$true] %s51
      %57 = dma.hbm_to_vmem [thread:$0]  %s4, 1024, %s52, [#allocation8], 128, 128, 8
    $region21: #{tpu_custom_call.1} parent=1 // pred_fallthru
      _
    // Predicated region
    $region22: #{tpu_custom_call.1} parent=1 // pred_check
      _
    $region23: #{tpu_custom_call.1} parent=1 // pred_check_branch
      %59 = sbr.rel (0) target = $region25
    $region24: #{tpu_custom_call.1} parent=1 // pred_region
      %s61 = ssub.s32 16, 16
      %62 = vsyncadd [#allocation11], %s61
      %s64 = sshll.u32 [#allocation10], 4
      %s65 = int_to_ptr.vmem [resolvable:$true] %s64
      %67 = dma.hbm_to_vmem [thread:$0]  %s5, 16, %s65, [#allocation11]
    $region25: #{tpu_custom_call.1} parent=1 // pred_fallthru
      _
    // Predicated region
    $region26: #{tpu_custom_call.1} parent=1 // pred_check
      _
    $region27: #{tpu_custom_call.1} parent=1 // pred_check_branch
      %69 = sbr.rel (0) target = $region29
    $region28: #{tpu_custom_call.1} parent=1 // pred_region
      %s71 = ssub.s32 40960, 40960
      %72 = vsyncadd [#allocation11], %s71
      %s73 = sshll.u32 [#allocation12], 4
      %s74 = int_to_ptr.vmem [resolvable:$true] %s73
      %79 = dma.hbm_to_vmem [thread:$0]  %s6, 40960, %s74, [#allocation11], 128, 128, 8
    $region29: #{tpu_custom_call.1} parent=1 // pred_fallthru
      _
    // Predicated region
    $region30: #{tpu_custom_call.1} parent=1 // pred_check
      _
    $region31: #{tpu_custom_call.1} parent=1 // pred_check_branch
      %81 = sbr.rel (0) target = $region33
    $region32: #{tpu_custom_call.1} parent=1 // pred_region
      %s83 = ssub.s32 640, 640
      %84 = vsyncadd [#allocation14], %s83
      %s85 = sshll.u32 [#allocation13], 4
      %s86 = int_to_ptr.vmem [resolvable:$true] %s85
      %91 = dma.hbm_to_vmem [thread:$0]  %s7, 640, %s86, [#allocation14], 16, 16, 1
    $region33: #{tpu_custom_call.1} parent=1 // pred_fallthru
      _
    // Predicated region
    $region34: #{tpu_custom_call.1} parent=1 // pred_check
      _
    $region35: #{tpu_custom_call.1} parent=1 // pred_check_branch
      %93 = sbr.rel (0) target = $region37
    $region36: #{tpu_custom_call.1} parent=1 // pred_region
      %s95 = ssub.s32 40960, 40960
      %96 = vsyncadd [#allocation14], %s95
      %s97 = sshll.u32 [#allocation15], 4
      %s98 = int_to_ptr.vmem [resolvable:$true] %s97
      %103 = dma.hbm_to_vmem [thread:$0]  %s8, 40960, %s98, [#allocation14], 128, 128, 8
    $region37: #{tpu_custom_call.1} parent=1 // pred_fallthru
      _
    // Predicated region
    $region38: #{tpu_custom_call.1} parent=1 // pred_check
      _
    $region39: #{tpu_custom_call.1} parent=1 // pred_check_branch
      %105 = sbr.rel (0) target = $region41
    $region40: #{tpu_custom_call.1} parent=1 // pred_region
      %s107 = ssub.s32 640, 640
      %108 = vsyncadd [#allocation17], %s107
      %s109 = sshll.u32 [#allocation16], 4
      %s110 = int_to_ptr.vmem [resolvable:$true] %s109
      %115 = dma.hbm_to_vmem [thread:$0]  %s9, 640, %s110, [#allocation17], 16, 16, 1
    $region41: #{tpu_custom_call.1} parent=1 // pred_fallthru
      _
    // Predicated region
    $region42: #{tpu_custom_call.1} parent=1 // pred_check
      _
    $region43: #{tpu_custom_call.1} parent=1 // pred_check_branch
      %117 = sbr.rel (0) target = $region45
    $region44: #{tpu_custom_call.1} parent=1 // pred_region
      %118 = dma.done [#allocation5], 32
    $region45: #{tpu_custom_call.1} parent=1 // pred_fallthru
      _
    // Predicated region
    $region46: #{tpu_custom_call.1} parent=1 // pred_check
      _
    $region47: #{tpu_custom_call.1} parent=1 // pred_check_branch
      %120 = sbr.rel (0) target = $region49
    $region48: #{tpu_custom_call.1} parent=1 // pred_region
      %121 = dma.done [#allocation8], 16
    $region49: #{tpu_custom_call.1} parent=1 // pred_fallthru
      _
    // Predicated region
    $region50: #{tpu_custom_call.1} parent=1 // pred_check
      _
    $region51: #{tpu_custom_call.1} parent=1 // pred_check_branch
      %123 = sbr.rel (0) target = $region53
    $region52: #{tpu_custom_call.1} parent=1 // pred_region
      %124 = dma.done [#allocation8], 1024
    $region53: #{tpu_custom_call.1} parent=1 // pred_fallthru
      _
    // Predicated region
    $region54: #{tpu_custom_call.1} parent=1 // pred_check
      _
    $region55: #{tpu_custom_call.1} parent=1 // pred_check_branch
      %126 = sbr.rel (0) target = $region57
    $region56: #{tpu_custom_call.1} parent=1 // pred_region
      %127 = dma.done [#allocation11], 16
    $region57: #{tpu_custom_call.1} parent=1 // pred_fallthru
      _
    // Predicated region
    $region58: #{tpu_custom_call.1} parent=1 // pred_check
      _
    $region59: #{tpu_custom_call.1} parent=1 // pred_check_branch
      %129 = sbr.rel (0) target = $region61
    $region60: #{tpu_custom_call.1} parent=1 // pred_region
      %130 = dma.done [#allocation11], 40960
    $region61: #{tpu_custom_call.1} parent=1 // pred_fallthru
      _
    // Predicated region
    $region62: #{tpu_custom_call.1} parent=1 // pred_check
      _
    $region63: #{tpu_custom_call.1} parent=1 // pred_check_branch
      %132 = sbr.rel (0) target = $region65
    $region64: #{tpu_custom_call.1} parent=1 // pred_region
      %133 = dma.done [#allocation14], 640
    $region65: #{tpu_custom_call.1} parent=1 // pred_fallthru
      _
    // Predicated region
    $region66: #{tpu_custom_call.1} parent=1 // pred_check
      _
    $region67: #{tpu_custom_call.1} parent=1 // pred_check_branch
      %135 = sbr.rel (0) target = $region69
    $region68: #{tpu_custom_call.1} parent=1 // pred_region
      %136 = dma.done [#allocation14], 40960
    $region69: #{tpu_custom_call.1} parent=1 // pred_fallthru
      _
    // Predicated region
    $region70: #{tpu_custom_call.1} parent=1 // pred_check
      _
    $region71: #{tpu_custom_call.1} parent=1 // pred_check_branch
      %138 = sbr.rel (0) target = $region73
    $region72: #{tpu_custom_call.1} parent=1 // pred_region
      %139 = dma.done [#allocation17], 640
    $region73: #{tpu_custom_call.1} parent=1 // pred_fallthru
      _
    %v140 = vld [vmem:[%s1] sm:$0xff]
    %v141 = vld [vmem:[#allocation7] sm:$0x1]
    %v142 = vld [vmem:[#allocation4] sm:$0x1]
    %144 = vset.pattern.permute.xlu0 0
    %145 = vperm.xlu0 %144, %v140
    %v146 = vpop.permute.xlu0 %145
    %v148 = vlaneseq
    %v149 = vshrl.u32 %v148, 7
    %v150 = vsub.s32 0, %v149
    %v151 = vrot.slane %v142, %v150
    %v152 = vmul.f32 %v146, %v151
    %v154 = vlaneseq
    %v155 = vshrl.u32 %v154, 7
    %v156 = vsub.s32 0, %v155
    %v157 = vrot.slane %v141, %v156
    %v159 = vadd.f32 %v157, %v152
    %v160 = vld [vmem:[#allocation4 + $0x1] sm:$0x1]
    %161 = vset.pattern.permute.xlu0 1
    %162 = vperm.xlu0 %161, %v140
    %v163 = vpop.permute.xlu0 %162
    %v165 = vlaneseq
    %v166 = vshrl.u32 %v165, 7
    %v167 = vsub.s32 0, %v166
    %v168 = vrot.slane %v160, %v167
    %v169 = vmul.f32 %v163, %v168
    %v170 = vadd.f32 %v159, %v169
    %v171 = vmax.f32 %v170, 0.0
    %v172 = vld [vmem:[#allocation9] sm:$0xff]
    %v173 = vld [vmem:[#allocation9 + $0x8] sm:$0xff]
    %v174 = vld [vmem:[#allocation9 + $0x10] sm:$0xff]
    %v175 = vld [vmem:[#allocation9 + $0x18] sm:$0xff]
    %v176 = vld [vmem:[#allocation9 + $0x20] sm:$0xff]
    %v177 = vld [vmem:[#allocation9 + $0x28] sm:$0xff]
    %v178 = vld [vmem:[#allocation9 + $0x30] sm:$0xff]
    %v179 = vld [vmem:[#allocation9 + $0x38] sm:$0xff]
    %v180 = vld [vmem:[#allocation10] sm:$0x1]
    %v182 = vlaneseq
    %v183 = vshrl.u32 %v182, 7
    %v184 = vsub.s32 0, %v183
    %v185 = vrot.slane %v180, %v184
    %vm187 = vcmask 523264
    %v189 = vsel %vm187, %v171, 0
    %191 = vmatprep.subr.mxu0 0.0
    %192 = vmatpush1.msra.mxu0 %v172
    %193 = vmatprep.subr.mxu0 0.0
    %194 = vmatpush1.msra.mxu0 %v173
    %195 = vmatprep.subr.mxu0 0.0
    %196 = vmatpush1.msra.mxu0 %v174
    %197 = vmatprep.subr.mxu0 0.0
    %198 = vmatpush1.msra.mxu0 %v175
    %199 = vmatprep.subr.mxu0 0.0
    %200 = vmatpush1.msra.mxu0 %v176
    %201 = vmatprep.subr.mxu0 0.0
    %202 = vmatpush1.msra.mxu0 %v177
    %203 = vmatprep.subr.mxu0 0.0
    %204 = vmatpush1.msra.mxu0 %v178
    %205 = vmatprep.subr.mxu0 0.0
    %206 = vmatpush1.msra.mxu0 %v179
    %207 = vmatprep.subr.mxu0 0.0
    %208 = vmatpush1.msra.mxu0 0.0
    %209 = vmatprep.subr.mxu0 0.0
    %210 = vmatpush1.msra.mxu0 0.0
    %211 = vmatprep.subr.mxu0 0.0
    %212 = vmatpush1.msra.mxu0 0.0
    %213 = vmatprep.subr.mxu0 0.0
    %214 = vmatpush1.msra.mxu0 0.0
    %215 = vmatprep.subr.mxu0 0.0
    %216 = vmatpush1.msra.mxu0 0.0
    %217 = vmatprep.subr.mxu0 0.0
    %218 = vmatpush1.msra.mxu0 0.0
    %219 = vmatprep.subr.mxu0 0.0
    %220 = vmatpush1.msra.mxu0 0.0
    %221 = vmatprep.subr.mxu0 0.0
    %222 = vmatpush1.msra.mxu0 0.0
    %223 = vmatprep.subr.mxu0 0.0
    %224 = vmatpush1.msra.mxu0 0.0
    %225 = vmatprep.subr.mxu0 0.0
    %226 = vmatpush1.msra.mxu0 0.0
    %227 = vmatprep.subr.mxu0 0.0
    %228 = vmatpush1.msra.mxu0 0.0
    %229 = vmatprep.subr.mxu0 0.0
    %230 = vmatpush1.msra.mxu0 0.0
    %231 = vmatprep.subr.mxu0 0.0
    %232 = vmatpush1.msra.mxu0 0.0
    %233 = vmatprep.subr.mxu0 0.0
    %234 = vmatpush1.msra.mxu0 0.0
    %235 = vmatprep.subr.mxu0 0.0
    %236 = vmatpush1.msra.mxu0 0.0
    %237 = vmatprep.subr.mxu0 0.0
    %238 = vmatpush1.msra.mxu0 0.0
    %239 = vmatprep.subr.mxu0 0.0
    %240 = vmatpush1.msra.mxu0 0.0
    %241 = vmatprep.subr.mxu0 0.0
    %242 = vmatpush1.msra.mxu0 0.0
    %243 = vmatprep.subr.mxu0 0.0
    %244 = vmatpush1.msra.mxu0 0.0
    %245 = vmatprep.subr.mxu0 0.0
    %246 = vmatpush1.msra.mxu0 0.0
    %247 = vmatprep.subr.mxu0 0.0
    %248 = vmatpush1.msra.mxu0 0.0
    %249 = vmatprep.subr.mxu0 0.0
    %250 = vmatpush1.msra.mxu0 0.0
    %251 = vmatprep.subr.mxu0 0.0
    %252 = vmatpush1.msra.mxu0 0.0
    %253 = vmatprep.subr.mxu0 0.0
    %254 = vmatpush1.msra.mxu0 0.0
    %255 = vmatprep.mubr.f32.mxu0 0.0
    %256 = vmatmul.mubr.f32.gmra.mrb[0].mxu0 %v189
    %v257 = vpop.f32.mrb[0].mxu0
    %v258 = vadd.f32 %v185, %v257
    %v259 = vpop.f32.mrb[0].mxu0
    %260 = vdwg.mxu0
    %v261 = vmax.f32 %v258, 0.0
    %262 = vst.msk [vmem:[#allocation2] sm:$0xff] %vm187, %v261
    %s263 = sld [smem:[#allocation3]]
    %v264 = vld [vmem:[#allocation2] sm:$0xff]
    %s265 = smul.u32 %s263, 64
    %s266 = scalar_lea.vmem [#allocation12], %s265
    %v267 = vld [vmem:[%s266] sm:$0xff]
    %v268 = vld [vmem:[%s266 + $0x8] sm:$0xff]
    %v269 = vld [vmem:[%s266 + $0x10] sm:$0xff]
    %v270 = vld [vmem:[%s266 + $0x18] sm:$0xff]
    %v271 = vld [vmem:[%s266 + $0x20] sm:$0xff]
    %v272 = vld [vmem:[%s266 + $0x28] sm:$0xff]
    %v273 = vld [vmem:[%s266 + $0x30] sm:$0xff]
    %v274 = vld [vmem:[%s266 + $0x38] sm:$0xff]
    %s275 = scalar_lea.vmem [#allocation13], %s263
    %v276 = vld [vmem:[%s275] sm:$0x1]
    %v278 = vlaneseq
    %v279 = vshrl.u32 %v278, 7
    %v280 = vsub.s32 0, %v279
    %v281 = vrot.slane %v276, %v280
    %v284 = vsel %vm187, %v264, 0
    %286 = vmatprep.subr.mxu0 0.0
    %287 = vmatpush1.msra.mxu0 %v267
    %288 = vmatprep.subr.mxu0 0.0
    %289 = vmatpush1.msra.mxu0 %v268
    %290 = vmatprep.subr.mxu0 0.0
    %291 = vmatpush1.msra.mxu0 %v269
    %292 = vmatprep.subr.mxu0 0.0
    %293 = vmatpush1.msra.mxu0 %v270
    %294 = vmatprep.subr.mxu0 0.0
    %295 = vmatpush1.msra.mxu0 %v271
    %296 = vmatprep.subr.mxu0 0.0
    %297 = vmatpush1.msra.mxu0 %v272
    %298 = vmatprep.subr.mxu0 0.0
    %299 = vmatpush1.msra.mxu0 %v273
    %300 = vmatprep.subr.mxu0 0.0
    %301 = vmatpush1.msra.mxu0 %v274
    %302 = vmatprep.subr.mxu0 0.0
    %303 = vmatpush1.msra.mxu0 0.0
    %304 = vmatprep.subr.mxu0 0.0
    %305 = vmatpush1.msra.mxu0 0.0
    %306 = vmatprep.subr.mxu0 0.0
    %307 = vmatpush1.msra.mxu0 0.0
    %308 = vmatprep.subr.mxu0 0.0
    %309 = vmatpush1.msra.mxu0 0.0
    %310 = vmatprep.subr.mxu0 0.0
    %311 = vmatpush1.msra.mxu0 0.0
    %312 = vmatprep.subr.mxu0 0.0
    %313 = vmatpush1.msra.mxu0 0.0
    %314 = vmatprep.subr.mxu0 0.0
    %315 = vmatpush1.msra.mxu0 0.0
    %316 = vmatprep.subr.mxu0 0.0
    %317 = vmatpush1.msra.mxu0 0.0
    %318 = vmatprep.subr.mxu0 0.0
    %319 = vmatpush1.msra.mxu0 0.0
    %320 = vmatprep.subr.mxu0 0.0
    %321 = vmatpush1.msra.mxu0 0.0
    %322 = vmatprep.subr.mxu0 0.0
    %323 = vmatpush1.msra.mxu0 0.0
    %324 = vmatprep.subr.mxu0 0.0
    %325 = vmatpush1.msra.mxu0 0.0
    %326 = vmatprep.subr.mxu0 0.0
    %327 = vmatpush1.msra.mxu0 0.0
    %328 = vmatprep.subr.mxu0 0.0
    %329 = vmatpush1.msra.mxu0 0.0
    %330 = vmatprep.subr.mxu0 0.0
    %331 = vmatpush1.msra.mxu0 0.0
    %332 = vmatprep.subr.mxu0 0.0
    %333 = vmatpush1.msra.mxu0 0.0
    %334 = vmatprep.subr.mxu0 0.0
    %335 = vmatpush1.msra.mxu0 0.0
    %336 = vmatprep.subr.mxu0 0.0
    %337 = vmatpush1.msra.mxu0 0.0
    %338 = vmatprep.subr.mxu0 0.0
    %339 = vmatpush1.msra.mxu0 0.0
    %340 = vmatprep.subr.mxu0 0.0
    %341 = vmatpush1.msra.mxu0 0.0
    %342 = vmatprep.subr.mxu0 0.0
    %343 = vmatpush1.msra.mxu0 0.0
    %344 = vmatprep.subr.mxu0 0.0
    %345 = vmatpush1.msra.mxu0 0.0
    %346 = vmatprep.subr.mxu0 0.0
    %347 = vmatpush1.msra.mxu0 0.0
    %348 = vmatprep.subr.mxu0 0.0
    %349 = vmatpush1.msra.mxu0 0.0
    %350 = vmatprep.mubr.f32.mxu0 0.0
    %351 = vmatmul.mubr.f32.gmra.mrb[0].mxu0 %v284
    %v352 = vpop.f32.mrb[0].mxu0
    %v353 = vadd.f32 %v281, %v352
    %v354 = vpop.f32.mrb[0].mxu0
    %355 = vdwg.mxu0
    %v356 = vmax.f32 %v353, 0.0
    %s357 = scalar_lea.vmem [#allocation15], %s265
    %v358 = vld [vmem:[%s357] sm:$0xff]
    %v359 = vld [vmem:[%s357 + $0x8] sm:$0xff]
    %v360 = vld [vmem:[%s357 + $0x10] sm:$0xff]
    %v361 = vld [vmem:[%s357 + $0x18] sm:$0xff]
    %v362 = vld [vmem:[%s357 + $0x20] sm:$0xff]
    %v363 = vld [vmem:[%s357 + $0x28] sm:$0xff]
    %v364 = vld [vmem:[%s357 + $0x30] sm:$0xff]
    %v365 = vld [vmem:[%s357 + $0x38] sm:$0xff]
    %s366 = scalar_lea.vmem [#allocation16], %s263
    %v367 = vld [vmem:[%s366] sm:$0x1]
    %v369 = vlaneseq
    %v370 = vshrl.u32 %v369, 7
    %v371 = vsub.s32 0, %v370
    %v372 = vrot.slane %v367, %v371
    %v375 = vsel %vm187, %v356, 0
    %377 = vmatprep.subr.mxu0 0.0
    %378 = vmatpush1.msra.mxu0 %v358
    %379 = vmatprep.subr.mxu0 0.0
    %380 = vmatpush1.msra.mxu0 %v359
    %381 = vmatprep.subr.mxu0 0.0
    %382 = vmatpush1.msra.mxu0 %v360
    %383 = vmatprep.subr.mxu0 0.0
    %384 = vmatpush1.msra.mxu0 %v361
    %385 = vmatprep.subr.mxu0 0.0
    %386 = vmatpush1.msra.mxu0 %v362
    %387 = vmatprep.subr.mxu0 0.0
    %388 = vmatpush1.msra.mxu0 %v363
    %389 = vmatprep.subr.mxu0 0.0
    %390 = vmatpush1.msra.mxu0 %v364
    %391 = vmatprep.subr.mxu0 0.0
    %392 = vmatpush1.msra.mxu0 %v365
    %393 = vmatprep.subr.mxu0 0.0
    %394 = vmatpush1.msra.mxu0 0.0
    %395 = vmatprep.subr.mxu0 0.0
    %396 = vmatpush1.msra.mxu0 0.0
    %397 = vmatprep.subr.mxu0 0.0
    %398 = vmatpush1.msra.mxu0 0.0
    %399 = vmatprep.subr.mxu0 0.0
    %400 = vmatpush1.msra.mxu0 0.0
    %401 = vmatprep.subr.mxu0 0.0
    %402 = vmatpush1.msra.mxu0 0.0
    %403 = vmatprep.subr.mxu0 0.0
    %404 = vmatpush1.msra.mxu0 0.0
    %405 = vmatprep.subr.mxu0 0.0
    %406 = vmatpush1.msra.mxu0 0.0
    %407 = vmatprep.subr.mxu0 0.0
    %408 = vmatpush1.msra.mxu0 0.0
    %409 = vmatprep.subr.mxu0 0.0
    %410 = vmatpush1.msra.mxu0 0.0
    %411 = vmatprep.subr.mxu0 0.0
    %412 = vmatpush1.msra.mxu0 0.0
    %413 = vmatprep.subr.mxu0 0.0
    %414 = vmatpush1.msra.mxu0 0.0
    %415 = vmatprep.subr.mxu0 0.0
    %416 = vmatpush1.msra.mxu0 0.0
    %417 = vmatprep.subr.mxu0 0.0
    %418 = vmatpush1.msra.mxu0 0.0
    %419 = vmatprep.subr.mxu0 0.0
    %420 = vmatpush1.msra.mxu0 0.0
    %421 = vmatprep.subr.mxu0 0.0
    %422 = vmatpush1.msra.mxu0 0.0
    %423 = vmatprep.subr.mxu0 0.0
    %424 = vmatpush1.msra.mxu0 0.0
    %425 = vmatprep.subr.mxu0 0.0
    %426 = vmatpush1.msra.mxu0 0.0
    %427 = vmatprep.subr.mxu0 0.0
    %428 = vmatpush1.msra.mxu0 0.0
    %429 = vmatprep.subr.mxu0 0.0
    %430 = vmatpush1.msra.mxu0 0.0
    %431 = vmatprep.subr.mxu0 0.0
    %432 = vmatpush1.msra.mxu0 0.0
    %433 = vmatprep.subr.mxu0 0.0
    %434 = vmatpush1.msra.mxu0 0.0
    %435 = vmatprep.subr.mxu0 0.0
    %436 = vmatpush1.msra.mxu0 0.0
    %437 = vmatprep.subr.mxu0 0.0
    %438 = vmatpush1.msra.mxu0 0.0
    %439 = vmatprep.subr.mxu0 0.0
    %440 = vmatpush1.msra.mxu0 0.0
    %441 = vmatprep.mubr.f32.mxu0 0.0
    %442 = vmatmul.mubr.f32.gmra.mrb[0].mxu0 %v375
    %v443 = vpop.f32.mrb[0].mxu0
    %v444 = vadd.f32 %v372, %v443
    %v445 = vpop.f32.mrb[0].mxu0
    %446 = vdwg.mxu0
    %447 = vst [vmem:[#allocation18] sm:$0xff] %v444
    // Predicated region
    $region74: #{tpu_custom_call.1} parent=1 // pred_check
      _
    $region75: #{tpu_custom_call.1} parent=1 // pred_check_branch
      %449 = sbr.rel (0) target = $region77
    $region76: #{tpu_custom_call.1} parent=1 // pred_region
      %s451 = ssub.s32 128, 128
      %452 = vsyncadd [#allocation6], %s451
      %s454 = sshll.u32 [#allocation18], 4
      %s455 = int_to_ptr.vmem [resolvable:$true] %s454
      %457 = dma.vmem_to_hbm [thread:$0]  %s455, 128, %s10, [#allocation6]
    $region77: #{tpu_custom_call.1} parent=1 // pred_fallthru
      _
    // Predicated region
    $region78: #{tpu_custom_call.1} parent=1 // pred_check
      _
    $region79: #{tpu_custom_call.1} parent=1 // pred_check_branch
      %459 = sbr.rel (0) target = $region81
    $region80: #{tpu_custom_call.1} parent=1 // pred_region
      %460 = dma.done [#allocation6], 128
    $region81: #{tpu_custom_call.1} parent=1 // pred_fallthru
      _
    %461 = vsyncpa [#allocation5], 1
    %462 = vsyncpa [#allocation8], 1
    %463 = vsyncpa [#allocation11], 1
    %464 = vsyncpa [#allocation14], 1
    %465 = vsyncpa [#allocation17], 1
    %466 = vsyncpa [#allocation6], 1

</llo_original>
